<compile_context>
chip_gen: v6e
topology: v6e:2x2x1
jax: 0.10.0
libtpu: 0.0.40
codegen_flags: <defaults>
</compile_context>

<pallas_src>
import functools

import jax
import jax.numpy as jnp
from jax import lax
from jax.experimental import pallas as pl
from jax.experimental.pallas import tpu as pltpu

_LANES = 128                               # lane-dense per-block partial tile
_SUB_TARGET_ELEMS = 64 * 1024              # ~256 KiB f32 per compute sub-chunk
_BLOCK_TARGET_BYTES = 16 * 1024 * 1024     # per-buffer DMA block target
_SMALL_BLOCK_BYTES = 1 * 1024 * 1024       # below this, ask for 3-deep pipeline

_FLOPS_PER_ELEM = {"l1": 1, "tv-fd": 6, "tv-fbd": 8, "sobel": 10, "nl": 10}


def _vmem_limit_bytes():
    """Scoped VMEM limit: 64 MiB on 128-MiB chips, 48 MiB on v7x/unknown."""
    cap = 64 * 1024 * 1024
    try:
        info = pltpu.get_tpu_info()
        cap = int(getattr(info, "vmem_capacity_bytes", cap)) or cap
    except Exception:
        pass
    return min(64 * 1024 * 1024, (cap * 3) // 4)


def _write_partials(o_ref, s0, s1, s2, s3):
    """Write 4 scalar partial sums as one lane-dense (4, 128) tile."""
    row = lax.broadcasted_iota(jnp.int32, (4, _LANES), 0)
    zero = jnp.float32(0.0)
    tile = (jnp.where(row == 0, s0, zero)
            + jnp.where(row == 1, s1, zero)
            + jnp.where(row == 2, s2, zero)
            + jnp.where(row == 3, s3, zero))
    o_ref[0] = tile


def _stencil_chunk_partials(xc, prior_type):
    """4 scalar partials for one (sub, h, w) float32 sub-chunk."""
    zero = jnp.float32(0.0)
    if prior_type == "tv-fd":
        adh = jnp.abs(xc[:, 1:, :] - xc[:, :-1, :])
        adw = jnp.abs(xc[:, :, 1:] - xc[:, :, :-1])
        return jnp.sum(adh), jnp.sum(adw), zero, zero
    if prior_type == "tv-fbd":
        adh = jnp.abs(xc[:, 1:, :] - xc[:, :-1, :])          # (sub, h-1, w)
        adw = jnp.abs(xc[:, :, 1:] - xc[:, :, :-1])          # (sub, h, w-1)
        th = jnp.sum(adh)
        tw = jnp.sum(adw)
        h_tv = th - jnp.sum(adh[:, :1, :])                   # rows 1.. of dh
        hb_tv = th - jnp.sum(adh[:, -1:, :])                 # rows ..-2 of dh
        w_tv = tw - jnp.sum(adw[:, :, :1])
        wb_tv = tw - jnp.sum(adw[:, :, -1:])
        return h_tv, hb_tv, w_tv, wb_tv
    if prior_type == "sobel":
        # Separable Sobel, 'valid' interior (== conv2d(padding=1)[1:-1,1:-1]).
        # [1,2,1] stencil as two pair-sums: no per-element multiply.
        d = xc[:, 2:, :] - xc[:, :-2, :]                     # (sub, h-2, w)
        s = d[:, :, :-1] + d[:, :, 1:]
        ty = s[:, :, :-1] + s[:, :, 1:]                      # d[j]+2d[j+1]+d[j+2]
        e = xc[:, :, 2:] - xc[:, :, :-2]                     # (sub, h, w-2)
        t = e[:, :-1, :] + e[:, 1:, :]
        tx = t[:, :-1, :] + t[:, 1:, :]
        return jnp.sum(jnp.abs(ty)), jnp.sum(jnp.abs(tx)), zero, zero
    if prior_type == "nl":
        # 3x3 non-local filter, taps grouped by symmetry; 1/12 applied to the
        # scalar sum instead of per element.
        r02 = xc[:, :-2, :] + xc[:, 2:, :]                   # rows i-1 + i+1
        r1 = xc[:, 1:-1, :]                                  # row  i
        corners = r02[:, :, :-2] + r02[:, :, 2:]
        edges = r02[:, :, 1:-1] + r1[:, :, :-2] + r1[:, :, 2:]
        s = jnp.sum(jnp.abs(corners + 2.0 * edges)) * jnp.float32(1.0 / 12.0)
        return s, zero, zero, zero
    raise ValueError(f"unknown prior_type: {prior_type}")


def _prior_kernel(x_ref, o_ref, *, prior_type, bc, tb, sub):
    """x_ref: (tb, h, w) block of image planes (original dtype)."""
    nsub = tb // sub
    ragged = (bc % tb) != 0            # trace-time: only ragged configs pay
    base = pl.program_id(0) * tb

    def chunk_partials(start):
        xc = x_ref[pl.ds(start, sub)].astype(jnp.float32)
        if ragged:
            plane = (base + start
                     + lax.broadcasted_iota(jnp.int32, (sub, 1, 1), 0))
            xc = jnp.where(plane < bc, xc, jnp.float32(0.0))
        return _stencil_chunk_partials(xc, prior_type)

    if nsub == 1:
        parts = chunk_partials(0)
    else:
        def body(s, carry):
            start = pl.multiple_of(s * sub, sub)
            return tuple(c + v for c, v in zip(carry, chunk_partials(start)))
        zero = jnp.float32(0.0)
        parts = lax.fori_loop(0, nsub, body, (zero, zero, zero, zero))

    _write_partials(o_ref, *parts)


def _l1_kernel(x_ref, o_ref, *, bc, tb, sub):
    """x_ref: (tb, h*w) lane-dense block; plain abs-sum reduction."""
    nsub = tb // sub
    ragged = (bc % tb) != 0
    base = pl.program_id(0) * tb

    def chunk_sum(start):
        xc = x_ref[pl.ds(start, sub), :].astype(jnp.float32)
        if ragged:
            row = (base + start
                   + lax.broadcasted_iota(jnp.int32, (sub, 1), 0))
            xc = jnp.where(row < bc, xc, jnp.float32(0.0))
        return jnp.sum(jnp.abs(xc))

    if nsub == 1:
        total = chunk_sum(0)
    else:
        def body(s, acc):
            start = pl.multiple_of(s * sub, sub)
            return acc + chunk_sum(start)
        total = lax.fori_loop(0, nsub, body, jnp.float32(0.0))

    zero = jnp.float32(0.0)
    _write_partials(o_ref, total, zero, zero, zero)


def _plan(bc, plane_elems, itemsize, block_budget_bytes, block_planes, sub_planes):
    """Pick (tb, sub): planes per DMA block and per compute sub-chunk, sub | tb."""
    if sub_planes is not None:
        sub = max(1, min(bc, int(sub_planes)))
    else:
        sub = max(1, min(bc, _SUB_TARGET_ELEMS // max(1, plane_elems)))
    if block_planes is not None:
        tb = max(1, min(bc, int(block_planes)))
    else:
        per_sub_bytes = max(1, sub * plane_elems * itemsize)
        k = max(1, block_budget_bytes // per_sub_bytes)
        tb = min(bc, sub * k)
        if bc > 1:
            tb = min(tb, -(-bc // 2))       # >= 2 grid steps (v7x has 2 TCs)
    sub = min(sub, tb)
    while tb % sub:
        sub -= 1
    return tb, sub


def prior_term_forward(x, reg_lambda, prior_type, *,
                       block_planes=None, sub_planes=None):
    """Pallas implementation of prior_term.forward.  x: (N, C, H, W)."""
    if prior_type not in _FLOPS_PER_ELEM:
        raise ValueError(f"unknown prior_type: {prior_type}")

    b, c, h, w = x.shape
    bc = b * c
    plane_elems = h * w
    itemsize = x.dtype.itemsize

    vmem_limit = _vmem_limit_bytes()
    block_budget = max(plane_elems * itemsize,
                       min(_BLOCK_TARGET_BYTES,
                           (vmem_limit - 16 * 1024 * 1024) // 2))

    if prior_type == "l1":
        # Lane-dense layout: the pure reduction does not need the 2D plane
        # structure, so flatten (free reshape) to avoid lane waste at small W.
        hw = plane_elems
        operand = x.reshape(bc, hw)
        tb, sub = _plan(bc, hw, itemsize, block_budget, block_planes, sub_planes)
        # Sublane constraint: block leading dim must be a multiple of 8 or == bc.
        if tb != bc and tb % 8 != 0:
            tb = min(bc, (tb // 8) * 8 + 8)
        if tb % 8 == 0:
            sub = max(8, (min(sub, tb) // 8) * 8)
            while tb % sub:
                sub -= 8
        else:                               # tiny single-block corner case
            sub = tb
        num_blocks = pl.cdiv(bc, tb)
        kernel = functools.partial(_l1_kernel, bc=bc, tb=tb, sub=sub)
        block_shape = (tb, hw)
        index_map = lambda i: (i, 0)
    else:
        operand = x.reshape(bc, h, w)       # original dtype; kernel casts in-reg
        tb, sub = _plan(bc, plane_elems, itemsize, block_budget,
                        block_planes, sub_planes)
        num_blocks = pl.cdiv(bc, tb)
        kernel = functools.partial(_prior_kernel, prior_type=prior_type,
                                   bc=bc, tb=tb, sub=sub)
        block_shape = (tb, h, w)
        index_map = lambda i: (i, 0, 0)

    # 3-deep pipelining only pays when blocks are tiny and numerous (v5e).
    block_bytes = tb * plane_elems * itemsize
    spec_kwargs = {}
    if block_bytes <= _SMALL_BLOCK_BYTES and num_blocks >= 3:
        spec_kwargs["pipeline_mode"] = pl.Buffered(3)
    in_spec = pl.BlockSpec(block_shape, index_map, **spec_kwargs)

    cost = pl.CostEstimate(
        flops=_FLOPS_PER_ELEM[prior_type] * bc * plane_elems,
        transcendentals=0,
        bytes_accessed=bc * plane_elems * itemsize + num_blocks * 4 * _LANES * 4)

    partials = pl.pallas_call(
        kernel,
        out_shape=jax.ShapeDtypeStruct((num_blocks, 4, _LANES), jnp.float32),
        grid=(num_blocks,),
        in_specs=[in_spec],
        out_specs=pl.BlockSpec((1, 4, _LANES), lambda i: (i, 0, 0)),
        compiler_params=pltpu.CompilerParams(
            dimension_semantics=("parallel",),
            vmem_limit_bytes=vmem_limit),
        cost_estimate=cost,
    )(operand)

    # Each block broadcast its 4 scalar partials across the lane dim; take
    # lane 0 and reduce across blocks (tiny array -> cheap XLA glue).
    sums = jnp.sum(partials[:, :, 0], axis=0)   # (4,)

    count_h = c * (h - 1) * w
    count_w = c * h * (w - 1)

    if prior_type == "l1":
        return reg_lambda * sums[0]
    if prior_type == "tv-fd":
        return reg_lambda * 2 * (0.5 * sums[0] / count_h
                                 + 0.5 * sums[1] / count_w) / b
    if prior_type == "tv-fbd":
        return reg_lambda * 2 * (0.25 * (sums[0] + sums[1]) / (count_h - 1)
                                 + 0.25 * (sums[2] + sums[3]) / (count_w - 1)) / b
    if prior_type == "sobel":
        # 0.1667 (not 1/6) matches the PyTorch reference constant on purpose.
        return reg_lambda * 2 * (0.1667 * sums[0] / (count_h - 1)
                                 + 0.1667 * sums[1] / (count_w - 1)) / b
    # "nl"
    return reg_lambda * sums[0] / ((count_h - 1) * b)


# ---------------- pure-JAX reference (for correctness checking) --------------
_SY_FILT = ((-1.0, -2.0, -1.0), (0.0, 0.0, 0.0), (1.0, 2.0, 1.0))
_SX_FILT = ((-1.0, 0.0, 1.0), (-2.0, 0.0, 2.0), (-1.0, 0.0, 1.0))
_NL_FILT = ((-1.0 / 12, -1.0 / 6, -1.0 / 12),
            (-1.0 / 6, 0.0, -1.0 / 6),
            (-1.0 / 12, -1.0 / 6, -1.0 / 12))


def _ref_conv3x3(x, filt):
    b, c, h, w = x.shape
    xr = x.reshape(b * c, 1, h, w).astype(jnp.float32)
    k = jnp.asarray(filt, jnp.float32).reshape(1, 1, 3, 3)
    out = jax.lax.conv_general_dilated(
        xr, k, window_strides=(1, 1), padding=((1, 1), (1, 1)),
        dimension_numbers=("NCHW", "OIHW", "NCHW"))
    return out.reshape(b, c, h, w)


def prior_term_reference(x, reg_lambda, prior_type):
    b, c, h, w = x.shape
    x = x.astype(jnp.float32)
    count_h = c * (h - 1) * w
    count_w = c * h * (w - 1)
    if prior_type == "l1":
        return reg_lambda * jnp.sum(jnp.abs(x))
    if prior_type == "tv-fd":
        h_tv = jnp.sum(jnp.abs(x[:, :, 1:, :] - x[:, :, :-1, :]))
        w_tv = jnp.sum(jnp.abs(x[:, :, :, 1:] - x[:, :, :, :-1]))
        return reg_lambda * 2 * (0.5 * h_tv / count_h + 0.5 * w_tv / count_w) / b
    if prior_type == "tv-fbd":
        dh = jnp.abs(x[:, :, 1:, :] - x[:, :, :-1, :])
        dw = jnp.abs(x[:, :, :, 1:] - x[:, :, :, :-1])
        h_tv = jnp.sum(dh[:, :, 1:, :]); hb_tv = jnp.sum(dh[:, :, :-1, :])
        w_tv = jnp.sum(dw[:, :, :, 1:]); wb_tv = jnp.sum(dw[:, :, :, :-1])
        return reg_lambda * 2 * (0.25 * (h_tv + hb_tv) / (count_h - 1)
                                 + 0.25 * (w_tv + wb_tv) / (count_w - 1)) / b
    if prior_type == "sobel":
        ry = jnp.sum(jnp.abs(_ref_conv3x3(x, _SY_FILT))[:, :, 1:-1, 1:-1])
        rx = jnp.sum(jnp.abs(_ref_conv3x3(x, _SX_FILT))[:, :, 1:-1, 1:-1])
        return reg_lambda * 2 * (0.1667 * ry / (count_h - 1)
                                 + 0.1667 * rx / (count_w - 1)) / b
    if prior_type == "nl":
        r = jnp.sum(jnp.abs(_ref_conv3x3(x, _NL_FILT))[:, :, 1:-1, 1:-1])
        return reg_lambda * r / ((count_h - 1) * b)
    raise ValueError(prior_type)


if __name__ == "__main__":
    key = jax.random.PRNGKey(0)
    reg_lambda = 0.1
    ok = True

    # Two small shapes: bc=8 (even split, no tail) and bc=10 (ragged tails on
    # both the stencil and the lane-dense l1 paths under default planning).
    for shape in ((2, 4, 16, 16), (2, 5, 16, 16)):
        x = jax.random.normal(jax.random.fold_in(key, shape[1]),
                              shape, dtype=jnp.float32)
        for prior_type in ("l1", "tv-fd", "tv-fbd", "sobel", "nl"):
            ref = prior_term_reference(x, reg_lambda, prior_type)

            out = jax.block_until_ready(
                prior_term_forward(x, reg_lambda, prior_type))
            if not jnp.allclose(out, ref, rtol=1e-4, atol=1e-4):
                ok = False
                print(f"MISMATCH {prior_type} {shape}: kernel={out} ref={ref}")

            # Forced multi-block / multi-sub-chunk path with a ragged tail
            # (exercises the fori_loop, the tail mask and pl.Buffered(3)).
            out2 = jax.block_until_ready(
                prior_term_forward(x, reg_lambda, prior_type,
                                   block_planes=3, sub_planes=1))
            if not jnp.allclose(out2, ref, rtol=1e-4, atol=1e-4):
                ok = False
                print(f"MISMATCH (tail) {prior_type} {shape}: "
                      f"kernel={out2} ref={ref}")

    if ok:
        print("KERNEL_OK")
</pallas_src>

<mosaic_0001>
module attributes {stable_mosaic.version = 11 : i64} {
  func.func @_l1_kernel(%arg0: i32, %arg1: memref<8x256xf32, #tpu.memory_space<vmem>>, %arg2: memref<1x4x128xf32, #tpu.memory_space<vmem>>) attributes {dimension_semantics = [#tpu.dimension_semantics<parallel>], iteration_bounds = array<i64: 1>, scalar_prefetch = 0 : i64, scratch_operands = 0 : i64, tpu.core_type = #tpu.core_type<tc>, window_params = [{transform_indices = @transform_0, window_bounds = array<i64: 8, 256>}, {transform_indices = @transform_1, window_bounds = array<i64: 1, 4, 128>}]} {
    %c0 = arith.constant 0 : index
    %c0_0 = arith.constant 0 : index
    %0 = vector.load %arg1[%c0, %c0_0] : memref<8x256xf32, #tpu.memory_space<vmem>>, vector<8x256xf32>
    %1 = math.absf %0 : vector<8x256xf32>
    %2 = vector.shape_cast %1 : vector<8x256xf32> to vector<1x8x256xf32>
    %cst = arith.constant dense<0.000000e+00> : vector<1xf32>
    %3 = vector.multi_reduction <add>, %2, %cst [1, 2] : vector<1x8x256xf32> to vector<1xf32>
    %4 = vector.shape_cast %3 : vector<1xf32> to vector<1x1x1xf32>
    %5 = vector.extract %4[0, 0, 0] : f32 from vector<1x1x1xf32>
    %6 = tpu.iota {dimensions = array<i32: 0>} : vector<4x128xi32>
    %c0_i32 = arith.constant 0 : i32
    %7 = vector.broadcast %c0_i32 : i32 to vector<4x128xi32>
    %8 = arith.cmpi eq, %6, %7 : vector<4x128xi32>
    %cst_1 = arith.constant 0.000000e+00 : f32
    %9 = vector.broadcast %5 : f32 to vector<4x128xf32>
    %10 = vector.broadcast %cst_1 : f32 to vector<4x128xf32>
    %11 = arith.select %8, %9, %10 : vector<4x128xi1>, vector<4x128xf32>
    %c1_i32 = arith.constant 1 : i32
    %12 = vector.broadcast %c1_i32 : i32 to vector<4x128xi32>
    %13 = arith.cmpi eq, %6, %12 : vector<4x128xi32>
    %cst_2 = arith.constant 0.000000e+00 : f32
    %cst_3 = arith.constant 0.000000e+00 : f32
    %14 = vector.broadcast %cst_2 : f32 to vector<4x128xf32>
    %15 = vector.broadcast %cst_3 : f32 to vector<4x128xf32>
    %16 = arith.select %13, %14, %15 : vector<4x128xi1>, vector<4x128xf32>
    %17 = arith.addf %11, %16 : vector<4x128xf32>
    %c2_i32 = arith.constant 2 : i32
    %18 = vector.broadcast %c2_i32 : i32 to vector<4x128xi32>
    %19 = arith.cmpi eq, %6, %18 : vector<4x128xi32>
    %cst_4 = arith.constant 0.000000e+00 : f32
    %cst_5 = arith.constant 0.000000e+00 : f32
    %20 = vector.broadcast %cst_4 : f32 to vector<4x128xf32>
    %21 = vector.broadcast %cst_5 : f32 to vector<4x128xf32>
    %22 = arith.select %19, %20, %21 : vector<4x128xi1>, vector<4x128xf32>
    %23 = arith.addf %17, %22 : vector<4x128xf32>
    %c3_i32 = arith.constant 3 : i32
    %24 = vector.broadcast %c3_i32 : i32 to vector<4x128xi32>
    %25 = arith.cmpi eq, %6, %24 : vector<4x128xi32>
    %cst_6 = arith.constant 0.000000e+00 : f32
    %cst_7 = arith.constant 0.000000e+00 : f32
    %26 = vector.broadcast %cst_6 : f32 to vector<4x128xf32>
    %27 = vector.broadcast %cst_7 : f32 to vector<4x128xf32>
    %28 = arith.select %25, %26, %27 : vector<4x128xi1>, vector<4x128xf32>
    %29 = arith.addf %23, %28 : vector<4x128xf32>
    %c0_8 = arith.constant 0 : index
    %c0_9 = arith.constant 0 : index
    %c0_10 = arith.constant 0 : index
    %30 = vector.load %arg2[%c0_8, %c0_9, %c0_10] : memref<1x4x128xf32, #tpu.memory_space<vmem>>, vector<1x4x128xf32>
    %31 = vector.shape_cast %30 : vector<1x4x128xf32> to vector<4x128xf32>
    %32 = vector.shape_cast %29 : vector<4x128xf32> to vector<1x4x128xf32>
    tpu.vector_store %arg2[%c0_8, %c0_9, %c0_10], %32 {strides = array<i32>} : memref<1x4x128xf32, #tpu.memory_space<vmem>>, vector<1x4x128xf32>,
    return
  }
  func.func @transform_0(%arg0: i32) -> (i32, i32) {
    %c0_i32 = arith.constant 0 : i32
    %c0_i32_0 = arith.constant 0 : i32
    return %arg0, %c0_i32 : i32, i32
  }
  func.func @transform_1(%arg0: i32) -> (i32, i32, i32) {
    %c0_i32 = arith.constant 0 : i32
    %c0_i32_0 = arith.constant 0 : i32
    %c0_i32_1 = arith.constant 0 : i32
    return %arg0, %c0_i32, %c0_i32_0 : i32, i32, i32
  }
}

</mosaic_0001>

<llo_original>
// kernel: tpu_custom_call.1
$region0: #{tpu_custom_call.1}
  #allocation0 [shape = 'u32[]', space=smem, size = 0x4, offset = 0x4, fixed_abs, tag = 'smem constant byte address 0x4 - core index']
  #allocation1 [shape = 'u32[144,128]{1,0:T(1,128)}', space=vmem, size = 0x12000, scoped, tag = 'internal scratch']
  %s0 = inlined_call_operand.hbm [shape: f32[8,256], index: 0, kind: input, shape index: {}]
  %s1 = inlined_call_operand.hbm [shape: f32[1,4,128], index: 1, kind: output, shape index: {}]
  %s2 = sld [smem:[#allocation0]]
  $region18: #{tpu_custom_call.1} parent=0
    _
  %s4 = ssub.s32 1, %s2
  %s5 = scalar_select 0, %s4, %s2
  $region1: #{tpu_custom_call.1} parent=0
    #allocation2 [shape = 'u8[8192]{0}', space=vmem, size = 0x2000, scoped, tag = 'input window, operand 0, single buffered']
    #allocation3 [shape = 's32[1]{0}', space=sflag, size = 0x4, scoped, tag = 'scoped memory for tpu_custom_call.1']
    #allocation4 [shape = 's32[1]{0}', space=sflag, size = 0x4, scoped, tag = 'scoped memory for tpu_custom_call.1']
    #allocation5 [shape = 'u8[2048]{0}', space=vmem, size = 0x800, scoped, tag = 'output window, operand 0, single buffered']
    %6 = vsyncpa [#allocation3], 0
    %7 = vsyncpa [#allocation4], 0
    // Predicated region
    $region2: #{tpu_custom_call.1} parent=1 // pred_check
      _
    $region3: #{tpu_custom_call.1} parent=1 // pred_check_branch
      %9 = sbr.rel (0) target = $region5
    $region4: #{tpu_custom_call.1} parent=1 // pred_region
      %s11 = ssub.s32 256, 256
      %12 = vsyncadd [#allocation3], %s11
      %s14 = sshll.u32 [#allocation2], 4
      %s15 = int_to_ptr.vmem [resolvable:$true] %s14
      %17 = dma.hbm_to_vmem [thread:$0]  %s0, 256, %s15, [#allocation3]
    $region5: #{tpu_custom_call.1} parent=1 // pred_fallthru
      _
    // Predicated region
    $region6: #{tpu_custom_call.1} parent=1 // pred_check
      _
    $region7: #{tpu_custom_call.1} parent=1 // pred_check_branch
      %19 = sbr.rel (0) target = $region9
    $region8: #{tpu_custom_call.1} parent=1 // pred_region
      %20 = dma.done [#allocation3], 256
    $region9: #{tpu_custom_call.1} parent=1 // pred_fallthru
      _
    %v21 = vld [vmem:[#allocation2] sm:$0xff]
    %v22 = vld [vmem:[#allocation2 + $0x8] sm:$0xff]
    %v23 = vand.u32 2147483647, %v21
    %v24 = vand.u32 2147483647, %v22
    %v25 = vadd.f32 %v23, %v24
    %26 = vadd.xlane.f32.xlu0 %v25
    %v27 = vpop.xlane.xlu0 %26
    %v28 = vrot.slane %v27, 4
    %v29 = vadd.f32 %v27, %v28
    %v30 = vrot.slane %v29, 2
    %v31 = vadd.f32 %v29, %v30
    %v32 = vrot.slane %v31, 1
    %v33 = vadd.f32 %v31, %v32
    %s34 = vtos %v33
    %v35 = vlaneseq
    %v36 = vshrl.u32 %v35, 7
    %vm37 = vcmp.eq.s32.totalorder %v36, 0
    %v38 = vstv %s34
    %v39 = vsel %vm37, %v38, 0.0
    %v40 = vadd.f32 %v39, 0.0
    %v41 = vadd.f32 %v40, 0.0
    %v42 = vadd.f32 %v41, 0.0
    %43 = vst [vmem:[#allocation5] sm:$0xf] %v42
    // Predicated region
    $region10: #{tpu_custom_call.1} parent=1 // pred_check
      _
    $region11: #{tpu_custom_call.1} parent=1 // pred_check_branch
      %45 = sbr.rel (0) target = $region13
    $region12: #{tpu_custom_call.1} parent=1 // pred_region
      %s47 = ssub.s32 64, 64
      %48 = vsyncadd [#allocation4], %s47
      %s50 = sshll.u32 [#allocation5], 4
      %s51 = int_to_ptr.vmem [resolvable:$true] %s50
      %53 = dma.vmem_to_hbm [thread:$0]  %s51, 64, %s1, [#allocation4]
    $region13: #{tpu_custom_call.1} parent=1 // pred_fallthru
      _
    // Predicated region
    $region14: #{tpu_custom_call.1} parent=1 // pred_check
      _
    $region15: #{tpu_custom_call.1} parent=1 // pred_check_branch
      %55 = sbr.rel (0) target = $region17
    $region16: #{tpu_custom_call.1} parent=1 // pred_region
      %56 = dma.done [#allocation4], 64
    $region17: #{tpu_custom_call.1} parent=1 // pred_fallthru
      _
    %57 = vsyncpa [#allocation3], 1
    %58 = vsyncpa [#allocation4], 1

</llo_original>
